<compile_context>
chip_gen: v7x
topology: tpu7x:2x2x1
jax: 0.10.0
libtpu: 0.0.40
codegen_flags: <defaults>
</compile_context>

<pallas_src>
import jax
import jax.numpy as jnp
from jax.experimental import pallas as pl
from jax.experimental.pallas import tpu as pltpu

HIDDEN = 20
LANES = 128


def mlp_kernel(params_ref, x_ref, o_ref):
    # params_ref: SMEM f32[2*HIDDEN + HIDDEN + 1] packed as
    #             [w1(20) | b1(20) | w2(20) | b2(1)]
    # x_ref:      VMEM (R, 128) lane-dense tile of the (flattened) batch
    # o_ref:      VMEM (R, 128) output tile
    x = x_ref[...]
    acc = jnp.full(x.shape, params_ref[3 * HIDDEN], dtype=jnp.float32)  # + b2
    # Unrolled 20-step VPU chain: scalar-broadcast FMA + ReLU + scalar FMA.
    for k in range(HIDDEN):
        h = jnp.maximum(x * params_ref[k] + params_ref[HIDDEN + k], 0.0)
        acc = acc + h * params_ref[2 * HIDDEN + k]
    o_ref[...] = acc.astype(o_ref.dtype)


def _round_up(a, b):
    return ((a + b - 1) // b) * b


def net_forward(x, w1, b1, w2, b2, *, max_rows=512):
    """x: (N, 1) float32. w1: (1,20), b1: (1,20) or (20,), w2: (20,1), b2: (1,1) or (1,).
    Returns (N, 1) float32 equal to relu(x @ w1 + b1) @ w2 + b2."""
    N, F = x.shape
    assert F == 1
    H = w1.shape[-1]
    assert H == HIDDEN

    # Pack the 61 parameter scalars into one SMEM-prefetched f32 vector.
    params = jnp.concatenate(
        [w1.reshape(-1), b1.reshape(-1), w2.reshape(-1), b2.reshape(-1)]
    ).astype(jnp.float32)

    # Lane-dense view: pad the flat batch to a whole number of (R, 128) blocks.
    n_rows_needed = pl.cdiv(N, LANES)                 # rows of 128 elements
    block_rows = min(max_rows, _round_up(n_rows_needed, 8))  # multiple of 8 sublanes
    n_blocks = pl.cdiv(n_rows_needed, block_rows)
    n_rows = n_blocks * block_rows
    n_pad_elems = n_rows * LANES

    x_flat = x.reshape(N)
    x_pad = jnp.pad(x_flat, (0, n_pad_elems - N))
    x2d = x_pad.reshape(n_rows, LANES)

    out2d = pl.pallas_call(
        mlp_kernel,
        out_shape=jax.ShapeDtypeStruct((n_rows, LANES), jnp.float32),
        grid_spec=pltpu.PrefetchScalarGridSpec(
            num_scalar_prefetch=1,
            grid=(n_blocks,),
            in_specs=[
                pl.BlockSpec((block_rows, LANES), lambda i, p: (i, 0)),
            ],
            out_specs=pl.BlockSpec((block_rows, LANES), lambda i, p: (i, 0)),
        ),
        compiler_params=pltpu.CompilerParams(
            dimension_semantics=("parallel",),
        ),
    )(params, x2d)

    # Drop the padded tail and restore the (N, 1) column layout.
    return out2d.reshape(n_pad_elems, 1)[:N]


def init_params(key, in_dim=1, hidden=HIDDEN, out_dim=1):
    """Deterministic init mimicking torch.nn.Linear default (uniform +-1/sqrt(fan_in)).
    Weights are stored transposed relative to PyTorch (in, out), so the kernel's
    y = relu(x @ W1 + b1) @ W2 + b2 matches torch semantics y = x W^T + b."""
    k1, k2, k3, k4 = jax.random.split(key, 4)
    bound1 = 1.0 / (in_dim ** 0.5)
    bound2 = 1.0 / (hidden ** 0.5)
    w1 = jax.random.uniform(k1, (in_dim, hidden), jnp.float32, -bound1, bound1)
    b1 = jax.random.uniform(k2, (1, hidden), jnp.float32, -bound1, bound1)
    w2 = jax.random.uniform(k3, (hidden, out_dim), jnp.float32, -bound2, bound2)
    b2 = jax.random.uniform(k4, (1, out_dim), jnp.float32, -bound2, bound2)
    return w1, b1, w2, b2


if __name__ == "__main__":
    key = jax.random.PRNGKey(0)
    w1, b1, w2, b2 = init_params(key)

    # Input consistent with the module: torch.unsqueeze(torch.linspace(-1, 1, 1500), dim=1)
    N = 1500
    x = jnp.linspace(-1.0, 1.0, N, dtype=jnp.float32).reshape(N, 1)

    y = net_forward(x, w1, b1, w2, b2)
    y = jax.block_until_ready(y)

    # Pure-JAX reference check of forward-pass semantics.
    y_ref = jnp.maximum(x @ w1 + b1, 0.0) @ w2 + b2
    assert y.shape == (N, 1)
    assert jnp.allclose(y, y_ref, atol=1e-5, rtol=1e-5)

    print("KERNEL_OK")
</pallas_src>

<mosaic_0001>
module attributes {stable_mosaic.version = 11 : i64} {
  func.func @mlp_kernel(%arg0: i32, %arg1: memref<61xf32, #tpu.memory_space<smem>>, %arg2: memref<16x128xf32, #tpu.memory_space<vmem>>, %arg3: memref<16x128xf32, #tpu.memory_space<vmem>>) attributes {dimension_semantics = [#tpu.dimension_semantics<parallel>], iteration_bounds = array<i64: 1>, scalar_prefetch = 1 : i64, scratch_operands = 0 : i64, tpu.core_type = #tpu.core_type<tc>, window_params = [{transform_indices = @transform_0, window_bounds = array<i64: 16, 128>}, {transform_indices = @transform_1, window_bounds = array<i64: 16, 128>}]} {
    %c0 = arith.constant 0 : index
    %c0_0 = arith.constant 0 : index
    %0 = vector.load %arg2[%c0, %c0_0] : memref<16x128xf32, #tpu.memory_space<vmem>>, vector<16x128xf32>
    %c60 = arith.constant 60 : index
    %1 = memref.load %arg1[%c60] : memref<61xf32, #tpu.memory_space<smem>>
    %2 = vector.broadcast %1 : f32 to vector<16x128xf32>
    %c0_1 = arith.constant 0 : index
    %3 = memref.load %arg1[%c0_1] : memref<61xf32, #tpu.memory_space<smem>>
    %4 = vector.broadcast %3 : f32 to vector<16x128xf32>
    %5 = arith.mulf %0, %4 : vector<16x128xf32>
    %c20 = arith.constant 20 : index
    %6 = memref.load %arg1[%c20] : memref<61xf32, #tpu.memory_space<smem>>
    %7 = vector.broadcast %6 : f32 to vector<16x128xf32>
    %8 = arith.addf %5, %7 : vector<16x128xf32>
    %cst = arith.constant 0.000000e+00 : f32
    %9 = vector.broadcast %cst : f32 to vector<16x128xf32>
    %10 = arith.maximumf %8, %9 : vector<16x128xf32>
    %c40 = arith.constant 40 : index
    %11 = memref.load %arg1[%c40] : memref<61xf32, #tpu.memory_space<smem>>
    %12 = vector.broadcast %11 : f32 to vector<16x128xf32>
    %13 = arith.mulf %10, %12 : vector<16x128xf32>
    %14 = arith.addf %2, %13 : vector<16x128xf32>
    %c1 = arith.constant 1 : index
    %15 = memref.load %arg1[%c1] : memref<61xf32, #tpu.memory_space<smem>>
    %16 = vector.broadcast %15 : f32 to vector<16x128xf32>
    %17 = arith.mulf %0, %16 : vector<16x128xf32>
    %c21 = arith.constant 21 : index
    %18 = memref.load %arg1[%c21] : memref<61xf32, #tpu.memory_space<smem>>
    %19 = vector.broadcast %18 : f32 to vector<16x128xf32>
    %20 = arith.addf %17, %19 : vector<16x128xf32>
    %cst_2 = arith.constant 0.000000e+00 : f32
    %21 = vector.broadcast %cst_2 : f32 to vector<16x128xf32>
    %22 = arith.maximumf %20, %21 : vector<16x128xf32>
    %c41 = arith.constant 41 : index
    %23 = memref.load %arg1[%c41] : memref<61xf32, #tpu.memory_space<smem>>
    %24 = vector.broadcast %23 : f32 to vector<16x128xf32>
    %25 = arith.mulf %22, %24 : vector<16x128xf32>
    %26 = arith.addf %14, %25 : vector<16x128xf32>
    %c2 = arith.constant 2 : index
    %27 = memref.load %arg1[%c2] : memref<61xf32, #tpu.memory_space<smem>>
    %28 = vector.broadcast %27 : f32 to vector<16x128xf32>
    %29 = arith.mulf %0, %28 : vector<16x128xf32>
    %c22 = arith.constant 22 : index
    %30 = memref.load %arg1[%c22] : memref<61xf32, #tpu.memory_space<smem>>
    %31 = vector.broadcast %30 : f32 to vector<16x128xf32>
    %32 = arith.addf %29, %31 : vector<16x128xf32>
    %cst_3 = arith.constant 0.000000e+00 : f32
    %33 = vector.broadcast %cst_3 : f32 to vector<16x128xf32>
    %34 = arith.maximumf %32, %33 : vector<16x128xf32>
    %c42 = arith.constant 42 : index
    %35 = memref.load %arg1[%c42] : memref<61xf32, #tpu.memory_space<smem>>
    %36 = vector.broadcast %35 : f32 to vector<16x128xf32>
    %37 = arith.mulf %34, %36 : vector<16x128xf32>
    %38 = arith.addf %26, %37 : vector<16x128xf32>
    %c3 = arith.constant 3 : index
    %39 = memref.load %arg1[%c3] : memref<61xf32, #tpu.memory_space<smem>>
    %40 = vector.broadcast %39 : f32 to vector<16x128xf32>
    %41 = arith.mulf %0, %40 : vector<16x128xf32>
    %c23 = arith.constant 23 : index
    %42 = memref.load %arg1[%c23] : memref<61xf32, #tpu.memory_space<smem>>
    %43 = vector.broadcast %42 : f32 to vector<16x128xf32>
    %44 = arith.addf %41, %43 : vector<16x128xf32>
    %cst_4 = arith.constant 0.000000e+00 : f32
    %45 = vector.broadcast %cst_4 : f32 to vector<16x128xf32>
    %46 = arith.maximumf %44, %45 : vector<16x128xf32>
    %c43 = arith.constant 43 : index
    %47 = memref.load %arg1[%c43] : memref<61xf32, #tpu.memory_space<smem>>
    %48 = vector.broadcast %47 : f32 to vector<16x128xf32>
    %49 = arith.mulf %46, %48 : vector<16x128xf32>
    %50 = arith.addf %38, %49 : vector<16x128xf32>
    %c4 = arith.constant 4 : index
    %51 = memref.load %arg1[%c4] : memref<61xf32, #tpu.memory_space<smem>>
    %52 = vector.broadcast %51 : f32 to vector<16x128xf32>
    %53 = arith.mulf %0, %52 : vector<16x128xf32>
    %c24 = arith.constant 24 : index
    %54 = memref.load %arg1[%c24] : memref<61xf32, #tpu.memory_space<smem>>
    %55 = vector.broadcast %54 : f32 to vector<16x128xf32>
    %56 = arith.addf %53, %55 : vector<16x128xf32>
    %cst_5 = arith.constant 0.000000e+00 : f32
    %57 = vector.broadcast %cst_5 : f32 to vector<16x128xf32>
    %58 = arith.maximumf %56, %57 : vector<16x128xf32>
    %c44 = arith.constant 44 : index
    %59 = memref.load %arg1[%c44] : memref<61xf32, #tpu.memory_space<smem>>
    %60 = vector.broadcast %59 : f32 to vector<16x128xf32>
    %61 = arith.mulf %58, %60 : vector<16x128xf32>
    %62 = arith.addf %50, %61 : vector<16x128xf32>
    %c5 = arith.constant 5 : index
    %63 = memref.load %arg1[%c5] : memref<61xf32, #tpu.memory_space<smem>>
    %64 = vector.broadcast %63 : f32 to vector<16x128xf32>
    %65 = arith.mulf %0, %64 : vector<16x128xf32>
    %c25 = arith.constant 25 : index
    %66 = memref.load %arg1[%c25] : memref<61xf32, #tpu.memory_space<smem>>
    %67 = vector.broadcast %66 : f32 to vector<16x128xf32>
    %68 = arith.addf %65, %67 : vector<16x128xf32>
    %cst_6 = arith.constant 0.000000e+00 : f32
    %69 = vector.broadcast %cst_6 : f32 to vector<16x128xf32>
    %70 = arith.maximumf %68, %69 : vector<16x128xf32>
    %c45 = arith.constant 45 : index
    %71 = memref.load %arg1[%c45] : memref<61xf32, #tpu.memory_space<smem>>
    %72 = vector.broadcast %71 : f32 to vector<16x128xf32>
    %73 = arith.mulf %70, %72 : vector<16x128xf32>
    %74 = arith.addf %62, %73 : vector<16x128xf32>
    %c6 = arith.constant 6 : index
    %75 = memref.load %arg1[%c6] : memref<61xf32, #tpu.memory_space<smem>>
    %76 = vector.broadcast %75 : f32 to vector<16x128xf32>
    %77 = arith.mulf %0, %76 : vector<16x128xf32>
    %c26 = arith.constant 26 : index
    %78 = memref.load %arg1[%c26] : memref<61xf32, #tpu.memory_space<smem>>
    %79 = vector.broadcast %78 : f32 to vector<16x128xf32>
    %80 = arith.addf %77, %79 : vector<16x128xf32>
    %cst_7 = arith.constant 0.000000e+00 : f32
    %81 = vector.broadcast %cst_7 : f32 to vector<16x128xf32>
    %82 = arith.maximumf %80, %81 : vector<16x128xf32>
    %c46 = arith.constant 46 : index
    %83 = memref.load %arg1[%c46] : memref<61xf32, #tpu.memory_space<smem>>
    %84 = vector.broadcast %83 : f32 to vector<16x128xf32>
    %85 = arith.mulf %82, %84 : vector<16x128xf32>
    %86 = arith.addf %74, %85 : vector<16x128xf32>
    %c7 = arith.constant 7 : index
    %87 = memref.load %arg1[%c7] : memref<61xf32, #tpu.memory_space<smem>>
    %88 = vector.broadcast %87 : f32 to vector<16x128xf32>
    %89 = arith.mulf %0, %88 : vector<16x128xf32>
    %c27 = arith.constant 27 : index
    %90 = memref.load %arg1[%c27] : memref<61xf32, #tpu.memory_space<smem>>
    %91 = vector.broadcast %90 : f32 to vector<16x128xf32>
    %92 = arith.addf %89, %91 : vector<16x128xf32>
    %cst_8 = arith.constant 0.000000e+00 : f32
    %93 = vector.broadcast %cst_8 : f32 to vector<16x128xf32>
    %94 = arith.maximumf %92, %93 : vector<16x128xf32>
    %c47 = arith.constant 47 : index
    %95 = memref.load %arg1[%c47] : memref<61xf32, #tpu.memory_space<smem>>
    %96 = vector.broadcast %95 : f32 to vector<16x128xf32>
    %97 = arith.mulf %94, %96 : vector<16x128xf32>
    %98 = arith.addf %86, %97 : vector<16x128xf32>
    %c8 = arith.constant 8 : index
    %99 = memref.load %arg1[%c8] : memref<61xf32, #tpu.memory_space<smem>>
    %100 = vector.broadcast %99 : f32 to vector<16x128xf32>
    %101 = arith.mulf %0, %100 : vector<16x128xf32>
    %c28 = arith.constant 28 : index
    %102 = memref.load %arg1[%c28] : memref<61xf32, #tpu.memory_space<smem>>
    %103 = vector.broadcast %102 : f32 to vector<16x128xf32>
    %104 = arith.addf %101, %103 : vector<16x128xf32>
    %cst_9 = arith.constant 0.000000e+00 : f32
    %105 = vector.broadcast %cst_9 : f32 to vector<16x128xf32>
    %106 = arith.maximumf %104, %105 : vector<16x128xf32>
    %c48 = arith.constant 48 : index
    %107 = memref.load %arg1[%c48] : memref<61xf32, #tpu.memory_space<smem>>
    %108 = vector.broadcast %107 : f32 to vector<16x128xf32>
    %109 = arith.mulf %106, %108 : vector<16x128xf32>
    %110 = arith.addf %98, %109 : vector<16x128xf32>
    %c9 = arith.constant 9 : index
    %111 = memref.load %arg1[%c9] : memref<61xf32, #tpu.memory_space<smem>>
    %112 = vector.broadcast %111 : f32 to vector<16x128xf32>
    %113 = arith.mulf %0, %112 : vector<16x128xf32>
    %c29 = arith.constant 29 : index
    %114 = memref.load %arg1[%c29] : memref<61xf32, #tpu.memory_space<smem>>
    %115 = vector.broadcast %114 : f32 to vector<16x128xf32>
    %116 = arith.addf %113, %115 : vector<16x128xf32>
    %cst_10 = arith.constant 0.000000e+00 : f32
    %117 = vector.broadcast %cst_10 : f32 to vector<16x128xf32>
    %118 = arith.maximumf %116, %117 : vector<16x128xf32>
    %c49 = arith.constant 49 : index
    %119 = memref.load %arg1[%c49] : memref<61xf32, #tpu.memory_space<smem>>
    %120 = vector.broadcast %119 : f32 to vector<16x128xf32>
    %121 = arith.mulf %118, %120 : vector<16x128xf32>
    %122 = arith.addf %110, %121 : vector<16x128xf32>
    %c10 = arith.constant 10 : index
    %123 = memref.load %arg1[%c10] : memref<61xf32, #tpu.memory_space<smem>>
    %124 = vector.broadcast %123 : f32 to vector<16x128xf32>
    %125 = arith.mulf %0, %124 : vector<16x128xf32>
    %c30 = arith.constant 30 : index
    %126 = memref.load %arg1[%c30] : memref<61xf32, #tpu.memory_space<smem>>
    %127 = vector.broadcast %126 : f32 to vector<16x128xf32>
    %128 = arith.addf %125, %127 : vector<16x128xf32>
    %cst_11 = arith.constant 0.000000e+00 : f32
    %129 = vector.broadcast %cst_11 : f32 to vector<16x128xf32>
    %130 = arith.maximumf %128, %129 : vector<16x128xf32>
    %c50 = arith.constant 50 : index
    %131 = memref.load %arg1[%c50] : memref<61xf32, #tpu.memory_space<smem>>
    %132 = vector.broadcast %131 : f32 to vector<16x128xf32>
    %133 = arith.mulf %130, %132 : vector<16x128xf32>
    %134 = arith.addf %122, %133 : vector<16x128xf32>
    %c11 = arith.constant 11 : index
    %135 = memref.load %arg1[%c11] : memref<61xf32, #tpu.memory_space<smem>>
    %136 = vector.broadcast %135 : f32 to vector<16x128xf32>
    %137 = arith.mulf %0, %136 : vector<16x128xf32>
    %c31 = arith.constant 31 : index
    %138 = memref.load %arg1[%c31] : memref<61xf32, #tpu.memory_space<smem>>
    %139 = vector.broadcast %138 : f32 to vector<16x128xf32>
    %140 = arith.addf %137, %139 : vector<16x128xf32>
    %cst_12 = arith.constant 0.000000e+00 : f32
    %141 = vector.broadcast %cst_12 : f32 to vector<16x128xf32>
    %142 = arith.maximumf %140, %141 : vector<16x128xf32>
    %c51 = arith.constant 51 : index
    %143 = memref.load %arg1[%c51] : memref<61xf32, #tpu.memory_space<smem>>
    %144 = vector.broadcast %143 : f32 to vector<16x128xf32>
    %145 = arith.mulf %142, %144 : vector<16x128xf32>
    %146 = arith.addf %134, %145 : vector<16x128xf32>
    %c12 = arith.constant 12 : index
    %147 = memref.load %arg1[%c12] : memref<61xf32, #tpu.memory_space<smem>>
    %148 = vector.broadcast %147 : f32 to vector<16x128xf32>
    %149 = arith.mulf %0, %148 : vector<16x128xf32>
    %c32 = arith.constant 32 : index
    %150 = memref.load %arg1[%c32] : memref<61xf32, #tpu.memory_space<smem>>
    %151 = vector.broadcast %150 : f32 to vector<16x128xf32>
    %152 = arith.addf %149, %151 : vector<16x128xf32>
    %cst_13 = arith.constant 0.000000e+00 : f32
    %153 = vector.broadcast %cst_13 : f32 to vector<16x128xf32>
    %154 = arith.maximumf %152, %153 : vector<16x128xf32>
    %c52 = arith.constant 52 : index
    %155 = memref.load %arg1[%c52] : memref<61xf32, #tpu.memory_space<smem>>
    %156 = vector.broadcast %155 : f32 to vector<16x128xf32>
    %157 = arith.mulf %154, %156 : vector<16x128xf32>
    %158 = arith.addf %146, %157 : vector<16x128xf32>
    %c13 = arith.constant 13 : index
    %159 = memref.load %arg1[%c13] : memref<61xf32, #tpu.memory_space<smem>>
    %160 = vector.broadcast %159 : f32 to vector<16x128xf32>
    %161 = arith.mulf %0, %160 : vector<16x128xf32>
    %c33 = arith.constant 33 : index
    %162 = memref.load %arg1[%c33] : memref<61xf32, #tpu.memory_space<smem>>
    %163 = vector.broadcast %162 : f32 to vector<16x128xf32>
    %164 = arith.addf %161, %163 : vector<16x128xf32>
    %cst_14 = arith.constant 0.000000e+00 : f32
    %165 = vector.broadcast %cst_14 : f32 to vector<16x128xf32>
    %166 = arith.maximumf %164, %165 : vector<16x128xf32>
    %c53 = arith.constant 53 : index
    %167 = memref.load %arg1[%c53] : memref<61xf32, #tpu.memory_space<smem>>
    %168 = vector.broadcast %167 : f32 to vector<16x128xf32>
    %169 = arith.mulf %166, %168 : vector<16x128xf32>
    %170 = arith.addf %158, %169 : vector<16x128xf32>
    %c14 = arith.constant 14 : index
    %171 = memref.load %arg1[%c14] : memref<61xf32, #tpu.memory_space<smem>>
    %172 = vector.broadcast %171 : f32 to vector<16x128xf32>
    %173 = arith.mulf %0, %172 : vector<16x128xf32>
    %c34 = arith.constant 34 : index
    %174 = memref.load %arg1[%c34] : memref<61xf32, #tpu.memory_space<smem>>
    %175 = vector.broadcast %174 : f32 to vector<16x128xf32>
    %176 = arith.addf %173, %175 : vector<16x128xf32>
    %cst_15 = arith.constant 0.000000e+00 : f32
    %177 = vector.broadcast %cst_15 : f32 to vector<16x128xf32>
    %178 = arith.maximumf %176, %177 : vector<16x128xf32>
    %c54 = arith.constant 54 : index
    %179 = memref.load %arg1[%c54] : memref<61xf32, #tpu.memory_space<smem>>
    %180 = vector.broadcast %179 : f32 to vector<16x128xf32>
    %181 = arith.mulf %178, %180 : vector<16x128xf32>
    %182 = arith.addf %170, %181 : vector<16x128xf32>
    %c15 = arith.constant 15 : index
    %183 = memref.load %arg1[%c15] : memref<61xf32, #tpu.memory_space<smem>>
    %184 = vector.broadcast %183 : f32 to vector<16x128xf32>
    %185 = arith.mulf %0, %184 : vector<16x128xf32>
    %c35 = arith.constant 35 : index
    %186 = memref.load %arg1[%c35] : memref<61xf32, #tpu.memory_space<smem>>
    %187 = vector.broadcast %186 : f32 to vector<16x128xf32>
    %188 = arith.addf %185, %187 : vector<16x128xf32>
    %cst_16 = arith.constant 0.000000e+00 : f32
    %189 = vector.broadcast %cst_16 : f32 to vector<16x128xf32>
    %190 = arith.maximumf %188, %189 : vector<16x128xf32>
    %c55 = arith.constant 55 : index
    %191 = memref.load %arg1[%c55] : memref<61xf32, #tpu.memory_space<smem>>
    %192 = vector.broadcast %191 : f32 to vector<16x128xf32>
    %193 = arith.mulf %190, %192 : vector<16x128xf32>
    %194 = arith.addf %182, %193 : vector<16x128xf32>
    %c16 = arith.constant 16 : index
    %195 = memref.load %arg1[%c16] : memref<61xf32, #tpu.memory_space<smem>>
    %196 = vector.broadcast %195 : f32 to vector<16x128xf32>
    %197 = arith.mulf %0, %196 : vector<16x128xf32>
    %c36 = arith.constant 36 : index
    %198 = memref.load %arg1[%c36] : memref<61xf32, #tpu.memory_space<smem>>
    %199 = vector.broadcast %198 : f32 to vector<16x128xf32>
    %200 = arith.addf %197, %199 : vector<16x128xf32>
    %cst_17 = arith.constant 0.000000e+00 : f32
    %201 = vector.broadcast %cst_17 : f32 to vector<16x128xf32>
    %202 = arith.maximumf %200, %201 : vector<16x128xf32>
    %c56 = arith.constant 56 : index
    %203 = memref.load %arg1[%c56] : memref<61xf32, #tpu.memory_space<smem>>
    %204 = vector.broadcast %203 : f32 to vector<16x128xf32>
    %205 = arith.mulf %202, %204 : vector<16x128xf32>
    %206 = arith.addf %194, %205 : vector<16x128xf32>
    %c17 = arith.constant 17 : index
    %207 = memref.load %arg1[%c17] : memref<61xf32, #tpu.memory_space<smem>>
    %208 = vector.broadcast %207 : f32 to vector<16x128xf32>
    %209 = arith.mulf %0, %208 : vector<16x128xf32>
    %c37 = arith.constant 37 : index
    %210 = memref.load %arg1[%c37] : memref<61xf32, #tpu.memory_space<smem>>
    %211 = vector.broadcast %210 : f32 to vector<16x128xf32>
    %212 = arith.addf %209, %211 : vector<16x128xf32>
    %cst_18 = arith.constant 0.000000e+00 : f32
    %213 = vector.broadcast %cst_18 : f32 to vector<16x128xf32>
    %214 = arith.maximumf %212, %213 : vector<16x128xf32>
    %c57 = arith.constant 57 : index
    %215 = memref.load %arg1[%c57] : memref<61xf32, #tpu.memory_space<smem>>
    %216 = vector.broadcast %215 : f32 to vector<16x128xf32>
    %217 = arith.mulf %214, %216 : vector<16x128xf32>
    %218 = arith.addf %206, %217 : vector<16x128xf32>
    %c18 = arith.constant 18 : index
    %219 = memref.load %arg1[%c18] : memref<61xf32, #tpu.memory_space<smem>>
    %220 = vector.broadcast %219 : f32 to vector<16x128xf32>
    %221 = arith.mulf %0, %220 : vector<16x128xf32>
    %c38 = arith.constant 38 : index
    %222 = memref.load %arg1[%c38] : memref<61xf32, #tpu.memory_space<smem>>
    %223 = vector.broadcast %222 : f32 to vector<16x128xf32>
    %224 = arith.addf %221, %223 : vector<16x128xf32>
    %cst_19 = arith.constant 0.000000e+00 : f32
    %225 = vector.broadcast %cst_19 : f32 to vector<16x128xf32>
    %226 = arith.maximumf %224, %225 : vector<16x128xf32>
    %c58 = arith.constant 58 : index
    %227 = memref.load %arg1[%c58] : memref<61xf32, #tpu.memory_space<smem>>
    %228 = vector.broadcast %227 : f32 to vector<16x128xf32>
    %229 = arith.mulf %226, %228 : vector<16x128xf32>
    %230 = arith.addf %218, %229 : vector<16x128xf32>
    %c19 = arith.constant 19 : index
    %231 = memref.load %arg1[%c19] : memref<61xf32, #tpu.memory_space<smem>>
    %232 = vector.broadcast %231 : f32 to vector<16x128xf32>
    %233 = arith.mulf %0, %232 : vector<16x128xf32>
    %c39 = arith.constant 39 : index
    %234 = memref.load %arg1[%c39] : memref<61xf32, #tpu.memory_space<smem>>
    %235 = vector.broadcast %234 : f32 to vector<16x128xf32>
    %236 = arith.addf %233, %235 : vector<16x128xf32>
    %cst_20 = arith.constant 0.000000e+00 : f32
    %237 = vector.broadcast %cst_20 : f32 to vector<16x128xf32>
    %238 = arith.maximumf %236, %237 : vector<16x128xf32>
    %c59 = arith.constant 59 : index
    %239 = memref.load %arg1[%c59] : memref<61xf32, #tpu.memory_space<smem>>
    %240 = vector.broadcast %239 : f32 to vector<16x128xf32>
    %241 = arith.mulf %238, %240 : vector<16x128xf32>
    %242 = arith.addf %230, %241 : vector<16x128xf32>
    %c0_21 = arith.constant 0 : index
    %c0_22 = arith.constant 0 : index
    %243 = vector.load %arg3[%c0_21, %c0_22] : memref<16x128xf32, #tpu.memory_space<vmem>>, vector<16x128xf32>
    tpu.vector_store %arg3[%c0_21, %c0_22], %242 {strides = array<i32>} : memref<16x128xf32, #tpu.memory_space<vmem>>, vector<16x128xf32>,
    return
  }
  func.func @transform_0(%arg0: i32, %arg1: memref<61xf32, #tpu.memory_space<smem>>) -> (i32, i32) {
    %c0_i32 = arith.constant 0 : i32
    %c0_i32_0 = arith.constant 0 : i32
    return %arg0, %c0_i32 : i32, i32
  }
  func.func @transform_1(%arg0: i32, %arg1: memref<61xf32, #tpu.memory_space<smem>>) -> (i32, i32) {
    %c0_i32 = arith.constant 0 : i32
    %c0_i32_0 = arith.constant 0 : i32
    return %arg0, %c0_i32 : i32, i32
  }
}

</mosaic_0001>

<llo_original>
// kernel: tpu_custom_call.1
$region0: #{tpu_custom_call.1}
  #allocation0 [shape = 'u32[]', space=smem, size = 0x4, offset = 0x4, fixed_abs, tag = 'smem constant byte address 0x4 - core index']
  #allocation1 [shape = 'u32[144,128]{1,0:T(1,128)}', space=vmem, size = 0x12000, scoped, tag = 'internal scratch']
  #allocation2 [shape = 's32[1]{0}', space=sflag, size = 0x4, scoped, tag = 'scoped memory for tpu_custom_call.1']
  #allocation3 [shape = 'u8[512]{0}', space=smem, size = 0x200, scoped, tag = 'prefetched SMEM operand 0']
  %s0 = inlined_call_operand.hbm [shape: f32[61], index: 0, kind: input, shape index: {}]
  %s1 = inlined_call_operand.hbm [shape: f32[16,128], index: 1, kind: input, shape index: {}]
  %s2 = inlined_call_operand.hbm [shape: f32[16,128], index: 2, kind: output, shape index: {}]
  %s3 = sld [smem:[#allocation0]]
  $region18: #{tpu_custom_call.1} parent=0
    _
  %s5 = ssub.s32 1, %s3
  %s6 = scalar_select 0, %s5, %s3
  %8 = dma.hbm_to_smem %s0, 16, [#allocation3], [#allocation2]
  %9 = dma.done [#allocation2], 16
  %10 = sfence
  $region1: #{tpu_custom_call.1} parent=0
    #allocation4 [shape = 'u8[8192]{0}', space=vmem, size = 0x2000, scoped, tag = 'input window, operand 1, single buffered']
    #allocation5 [shape = 's32[1]{0}', space=sflag, size = 0x4, scoped, tag = 'scoped memory for tpu_custom_call.1']
    #allocation6 [shape = 's32[1]{0}', space=sflag, size = 0x4, scoped, tag = 'scoped memory for tpu_custom_call.1']
    #allocation7 [shape = 'u8[8192]{0}', space=vmem, size = 0x2000, scoped, tag = 'output window, operand 0, single buffered']
    %11 = vsyncpa [#allocation5], 0
    %12 = vsyncpa [#allocation6], 0
    // Predicated region
    $region2: #{tpu_custom_call.1} parent=1 // pred_check
      _
    $region3: #{tpu_custom_call.1} parent=1 // pred_check_branch
      %14 = sbr.rel (0) target = $region5
    $region4: #{tpu_custom_call.1} parent=1 // pred_region
      %s16 = ssub.s32 256, 256
      %17 = vsyncadd [#allocation5], %s16
      %s18 = sshll.u32 [#allocation4], 4
      %s19 = int_to_ptr.vmem [resolvable:$true] %s18
      %24 = dma.hbm_to_vmem [thread:$0]  %s1, 256, %s19, [#allocation5], 128, 128, 8
    $region5: #{tpu_custom_call.1} parent=1 // pred_fallthru
      _
    // Predicated region
    $region6: #{tpu_custom_call.1} parent=1 // pred_check
      _
    $region7: #{tpu_custom_call.1} parent=1 // pred_check_branch
      %26 = sbr.rel (0) target = $region9
    $region8: #{tpu_custom_call.1} parent=1 // pred_region
      %27 = dma.done [#allocation5], 256
    $region9: #{tpu_custom_call.1} parent=1 // pred_fallthru
      _
    %v28 = vld [vmem:[#allocation4] sm:$0xff]
    %v29 = vld [vmem:[#allocation4 + $0x8] sm:$0xff]
    %s30 = sld [smem:[#allocation3 + $0x3c]]
    %v31 = vstv %s30
    %s32 = sld [smem:[#allocation3]]
    %v33 = vstv %s32
    %v34 = vmul.f32 %v28, %v33
    %v35 = vmul.f32 %v29, %v33
    %s36 = sld [smem:[#allocation3 + $0x14]]
    %v37 = vstv %s36
    %v38 = vadd.f32 %v34, %v37
    %v39 = vadd.f32 %v35, %v37
    %v40 = vmax.f32 %v38, 0.0
    %v41 = vmax.f32 %v39, 0.0
    %s42 = sld [smem:[#allocation3 + $0x28]]
    %v43 = vstv %s42
    %v44 = vmul.f32 %v40, %v43
    %v45 = vmul.f32 %v41, %v43
    %v46 = vadd.f32 %v31, %v44
    %v47 = vadd.f32 %v31, %v45
    %s48 = sld [smem:[#allocation3 + $0x1]]
    %v49 = vstv %s48
    %v50 = vmul.f32 %v28, %v49
    %v51 = vmul.f32 %v29, %v49
    %s52 = sld [smem:[#allocation3 + $0x15]]
    %v53 = vstv %s52
    %v54 = vadd.f32 %v50, %v53
    %v55 = vadd.f32 %v51, %v53
    %v56 = vmax.f32 %v54, 0.0
    %v57 = vmax.f32 %v55, 0.0
    %s58 = sld [smem:[#allocation3 + $0x29]]
    %v59 = vstv %s58
    %v60 = vmul.f32 %v56, %v59
    %v61 = vmul.f32 %v57, %v59
    %v62 = vadd.f32 %v46, %v60
    %v63 = vadd.f32 %v47, %v61
    %s64 = sld [smem:[#allocation3 + $0x2]]
    %v65 = vstv %s64
    %v66 = vmul.f32 %v28, %v65
    %v67 = vmul.f32 %v29, %v65
    %s68 = sld [smem:[#allocation3 + $0x16]]
    %v69 = vstv %s68
    %v70 = vadd.f32 %v66, %v69
    %v71 = vadd.f32 %v67, %v69
    %v72 = vmax.f32 %v70, 0.0
    %v73 = vmax.f32 %v71, 0.0
    %s74 = sld [smem:[#allocation3 + $0x2a]]
    %v75 = vstv %s74
    %v76 = vmul.f32 %v72, %v75
    %v77 = vmul.f32 %v73, %v75
    %v78 = vadd.f32 %v62, %v76
    %v79 = vadd.f32 %v63, %v77
    %s80 = sld [smem:[#allocation3 + $0x3]]
    %v81 = vstv %s80
    %v82 = vmul.f32 %v28, %v81
    %v83 = vmul.f32 %v29, %v81
    %s84 = sld [smem:[#allocation3 + $0x17]]
    %v85 = vstv %s84
    %v86 = vadd.f32 %v82, %v85
    %v87 = vadd.f32 %v83, %v85
    %v88 = vmax.f32 %v86, 0.0
    %v89 = vmax.f32 %v87, 0.0
    %s90 = sld [smem:[#allocation3 + $0x2b]]
    %v91 = vstv %s90
    %v92 = vmul.f32 %v88, %v91
    %v93 = vmul.f32 %v89, %v91
    %v94 = vadd.f32 %v78, %v92
    %v95 = vadd.f32 %v79, %v93
    %s96 = sld [smem:[#allocation3 + $0x4]]
    %v97 = vstv %s96
    %v98 = vmul.f32 %v28, %v97
    %v99 = vmul.f32 %v29, %v97
    %s100 = sld [smem:[#allocation3 + $0x18]]
    %v101 = vstv %s100
    %v102 = vadd.f32 %v98, %v101
    %v103 = vadd.f32 %v99, %v101
    %v104 = vmax.f32 %v102, 0.0
    %v105 = vmax.f32 %v103, 0.0
    %s106 = sld [smem:[#allocation3 + $0x2c]]
    %v107 = vstv %s106
    %v108 = vmul.f32 %v104, %v107
    %v109 = vmul.f32 %v105, %v107
    %v110 = vadd.f32 %v94, %v108
    %v111 = vadd.f32 %v95, %v109
    %s112 = sld [smem:[#allocation3 + $0x5]]
    %v113 = vstv %s112
    %v114 = vmul.f32 %v28, %v113
    %v115 = vmul.f32 %v29, %v113
    %s116 = sld [smem:[#allocation3 + $0x19]]
    %v117 = vstv %s116
    %v118 = vadd.f32 %v114, %v117
    %v119 = vadd.f32 %v115, %v117
    %v120 = vmax.f32 %v118, 0.0
    %v121 = vmax.f32 %v119, 0.0
    %s122 = sld [smem:[#allocation3 + $0x2d]]
    %v123 = vstv %s122
    %v124 = vmul.f32 %v120, %v123
    %v125 = vmul.f32 %v121, %v123
    %v126 = vadd.f32 %v110, %v124
    %v127 = vadd.f32 %v111, %v125
    %s128 = sld [smem:[#allocation3 + $0x6]]
    %v129 = vstv %s128
    %v130 = vmul.f32 %v28, %v129
    %v131 = vmul.f32 %v29, %v129
    %s132 = sld [smem:[#allocation3 + $0x1a]]
    %v133 = vstv %s132
    %v134 = vadd.f32 %v130, %v133
    %v135 = vadd.f32 %v131, %v133
    %v136 = vmax.f32 %v134, 0.0
    %v137 = vmax.f32 %v135, 0.0
    %s138 = sld [smem:[#allocation3 + $0x2e]]
    %v139 = vstv %s138
    %v140 = vmul.f32 %v136, %v139
    %v141 = vmul.f32 %v137, %v139
    %v142 = vadd.f32 %v126, %v140
    %v143 = vadd.f32 %v127, %v141
    %s144 = sld [smem:[#allocation3 + $0x7]]
    %v145 = vstv %s144
    %v146 = vmul.f32 %v28, %v145
    %v147 = vmul.f32 %v29, %v145
    %s148 = sld [smem:[#allocation3 + $0x1b]]
    %v149 = vstv %s148
    %v150 = vadd.f32 %v146, %v149
    %v151 = vadd.f32 %v147, %v149
    %v152 = vmax.f32 %v150, 0.0
    %v153 = vmax.f32 %v151, 0.0
    %s154 = sld [smem:[#allocation3 + $0x2f]]
    %v155 = vstv %s154
    %v156 = vmul.f32 %v152, %v155
    %v157 = vmul.f32 %v153, %v155
    %v158 = vadd.f32 %v142, %v156
    %v159 = vadd.f32 %v143, %v157
    %s160 = sld [smem:[#allocation3 + $0x8]]
    %v161 = vstv %s160
    %v162 = vmul.f32 %v28, %v161
    %v163 = vmul.f32 %v29, %v161
    %s164 = sld [smem:[#allocation3 + $0x1c]]
    %v165 = vstv %s164
    %v166 = vadd.f32 %v162, %v165
    %v167 = vadd.f32 %v163, %v165
    %v168 = vmax.f32 %v166, 0.0
    %v169 = vmax.f32 %v167, 0.0
    %s170 = sld [smem:[#allocation3 + $0x30]]
    %v171 = vstv %s170
    %v172 = vmul.f32 %v168, %v171
    %v173 = vmul.f32 %v169, %v171
    %v174 = vadd.f32 %v158, %v172
    %v175 = vadd.f32 %v159, %v173
    %s176 = sld [smem:[#allocation3 + $0x9]]
    %v177 = vstv %s176
    %v178 = vmul.f32 %v28, %v177
    %v179 = vmul.f32 %v29, %v177
    %s180 = sld [smem:[#allocation3 + $0x1d]]
    %v181 = vstv %s180
    %v182 = vadd.f32 %v178, %v181
    %v183 = vadd.f32 %v179, %v181
    %v184 = vmax.f32 %v182, 0.0
    %v185 = vmax.f32 %v183, 0.0
    %s186 = sld [smem:[#allocation3 + $0x31]]
    %v187 = vstv %s186
    %v188 = vmul.f32 %v184, %v187
    %v189 = vmul.f32 %v185, %v187
    %v190 = vadd.f32 %v174, %v188
    %v191 = vadd.f32 %v175, %v189
    %s192 = sld [smem:[#allocation3 + $0xa]]
    %v193 = vstv %s192
    %v194 = vmul.f32 %v28, %v193
    %v195 = vmul.f32 %v29, %v193
    %s196 = sld [smem:[#allocation3 + $0x1e]]
    %v197 = vstv %s196
    %v198 = vadd.f32 %v194, %v197
    %v199 = vadd.f32 %v195, %v197
    %v200 = vmax.f32 %v198, 0.0
    %v201 = vmax.f32 %v199, 0.0
    %s202 = sld [smem:[#allocation3 + $0x32]]
    %v203 = vstv %s202
    %v204 = vmul.f32 %v200, %v203
    %v205 = vmul.f32 %v201, %v203
    %v206 = vadd.f32 %v190, %v204
    %v207 = vadd.f32 %v191, %v205
    %s208 = sld [smem:[#allocation3 + $0xb]]
    %v209 = vstv %s208
    %v210 = vmul.f32 %v28, %v209
    %v211 = vmul.f32 %v29, %v209
    %s212 = sld [smem:[#allocation3 + $0x1f]]
    %v213 = vstv %s212
    %v214 = vadd.f32 %v210, %v213
    %v215 = vadd.f32 %v211, %v213
    %v216 = vmax.f32 %v214, 0.0
    %v217 = vmax.f32 %v215, 0.0
    %s218 = sld [smem:[#allocation3 + $0x33]]
    %v219 = vstv %s218
    %v220 = vmul.f32 %v216, %v219
    %v221 = vmul.f32 %v217, %v219
    %v222 = vadd.f32 %v206, %v220
    %v223 = vadd.f32 %v207, %v221
    %s224 = sld [smem:[#allocation3 + $0xc]]
    %v225 = vstv %s224
    %v226 = vmul.f32 %v28, %v225
    %v227 = vmul.f32 %v29, %v225
    %s228 = sld [smem:[#allocation3 + $0x20]]
    %v229 = vstv %s228
    %v230 = vadd.f32 %v226, %v229
    %v231 = vadd.f32 %v227, %v229
    %v232 = vmax.f32 %v230, 0.0
    %v233 = vmax.f32 %v231, 0.0
    %s234 = sld [smem:[#allocation3 + $0x34]]
    %v235 = vstv %s234
    %v236 = vmul.f32 %v232, %v235
    %v237 = vmul.f32 %v233, %v235
    %v238 = vadd.f32 %v222, %v236
    %v239 = vadd.f32 %v223, %v237
    %s240 = sld [smem:[#allocation3 + $0xd]]
    %v241 = vstv %s240
    %v242 = vmul.f32 %v28, %v241
    %v243 = vmul.f32 %v29, %v241
    %s244 = sld [smem:[#allocation3 + $0x21]]
    %v245 = vstv %s244
    %v246 = vadd.f32 %v242, %v245
    %v247 = vadd.f32 %v243, %v245
    %v248 = vmax.f32 %v246, 0.0
    %v249 = vmax.f32 %v247, 0.0
    %s250 = sld [smem:[#allocation3 + $0x35]]
    %v251 = vstv %s250
    %v252 = vmul.f32 %v248, %v251
    %v253 = vmul.f32 %v249, %v251
    %v254 = vadd.f32 %v238, %v252
    %v255 = vadd.f32 %v239, %v253
    %s256 = sld [smem:[#allocation3 + $0xe]]
    %v257 = vstv %s256
    %v258 = vmul.f32 %v28, %v257
    %v259 = vmul.f32 %v29, %v257
    %s260 = sld [smem:[#allocation3 + $0x22]]
    %v261 = vstv %s260
    %v262 = vadd.f32 %v258, %v261
    %v263 = vadd.f32 %v259, %v261
    %v264 = vmax.f32 %v262, 0.0
    %v265 = vmax.f32 %v263, 0.0
    %s266 = sld [smem:[#allocation3 + $0x36]]
    %v267 = vstv %s266
    %v268 = vmul.f32 %v264, %v267
    %v269 = vmul.f32 %v265, %v267
    %v270 = vadd.f32 %v254, %v268
    %v271 = vadd.f32 %v255, %v269
    %s272 = sld [smem:[#allocation3 + $0xf]]
    %v273 = vstv %s272
    %v274 = vmul.f32 %v28, %v273
    %v275 = vmul.f32 %v29, %v273
    %s276 = sld [smem:[#allocation3 + $0x23]]
    %v277 = vstv %s276
    %v278 = vadd.f32 %v274, %v277
    %v279 = vadd.f32 %v275, %v277
    %v280 = vmax.f32 %v278, 0.0
    %v281 = vmax.f32 %v279, 0.0
    %s282 = sld [smem:[#allocation3 + $0x37]]
    %v283 = vstv %s282
    %v284 = vmul.f32 %v280, %v283
    %v285 = vmul.f32 %v281, %v283
    %v286 = vadd.f32 %v270, %v284
    %v287 = vadd.f32 %v271, %v285
    %s288 = sld [smem:[#allocation3 + $0x10]]
    %v289 = vstv %s288
    %v290 = vmul.f32 %v28, %v289
    %v291 = vmul.f32 %v29, %v289
    %s292 = sld [smem:[#allocation3 + $0x24]]
    %v293 = vstv %s292
    %v294 = vadd.f32 %v290, %v293
    %v295 = vadd.f32 %v291, %v293
    %v296 = vmax.f32 %v294, 0.0
    %v297 = vmax.f32 %v295, 0.0
    %s298 = sld [smem:[#allocation3 + $0x38]]
    %v299 = vstv %s298
    %v300 = vmul.f32 %v296, %v299
    %v301 = vmul.f32 %v297, %v299
    %v302 = vadd.f32 %v286, %v300
    %v303 = vadd.f32 %v287, %v301
    %s304 = sld [smem:[#allocation3 + $0x11]]
    %v305 = vstv %s304
    %v306 = vmul.f32 %v28, %v305
    %v307 = vmul.f32 %v29, %v305
    %s308 = sld [smem:[#allocation3 + $0x25]]
    %v309 = vstv %s308
    %v310 = vadd.f32 %v306, %v309
    %v311 = vadd.f32 %v307, %v309
    %v312 = vmax.f32 %v310, 0.0
    %v313 = vmax.f32 %v311, 0.0
    %s314 = sld [smem:[#allocation3 + $0x39]]
    %v315 = vstv %s314
    %v316 = vmul.f32 %v312, %v315
    %v317 = vmul.f32 %v313, %v315
    %v318 = vadd.f32 %v302, %v316
    %v319 = vadd.f32 %v303, %v317
    %s320 = sld [smem:[#allocation3 + $0x12]]
    %v321 = vstv %s320
    %v322 = vmul.f32 %v28, %v321
    %v323 = vmul.f32 %v29, %v321
    %s324 = sld [smem:[#allocation3 + $0x26]]
    %v325 = vstv %s324
    %v326 = vadd.f32 %v322, %v325
    %v327 = vadd.f32 %v323, %v325
    %v328 = vmax.f32 %v326, 0.0
    %v329 = vmax.f32 %v327, 0.0
    %s330 = sld [smem:[#allocation3 + $0x3a]]
    %v331 = vstv %s330
    %v332 = vmul.f32 %v328, %v331
    %v333 = vmul.f32 %v329, %v331
    %v334 = vadd.f32 %v318, %v332
    %v335 = vadd.f32 %v319, %v333
    %s336 = sld [smem:[#allocation3 + $0x13]]
    %v337 = vstv %s336
    %v338 = vmul.f32 %v28, %v337
    %v339 = vmul.f32 %v29, %v337
    %s340 = sld [smem:[#allocation3 + $0x27]]
    %v341 = vstv %s340
    %v342 = vadd.f32 %v338, %v341
    %v343 = vadd.f32 %v339, %v341
    %v344 = vmax.f32 %v342, 0.0
    %v345 = vmax.f32 %v343, 0.0
    %s346 = sld [smem:[#allocation3 + $0x3b]]
    %v347 = vstv %s346
    %v348 = vmul.f32 %v344, %v347
    %v349 = vmul.f32 %v345, %v347
    %v350 = vadd.f32 %v334, %v348
    %v351 = vadd.f32 %v335, %v349
    %352 = vst [vmem:[#allocation7] sm:$0xff] %v350
    %353 = vst [vmem:[#allocation7 + $0x8] sm:$0xff] %v351
    // Predicated region
    $region10: #{tpu_custom_call.1} parent=1 // pred_check
      _
    $region11: #{tpu_custom_call.1} parent=1 // pred_check_branch
      %355 = sbr.rel (0) target = $region13
    $region12: #{tpu_custom_call.1} parent=1 // pred_region
      %s357 = ssub.s32 256, 256
      %358 = vsyncadd [#allocation6], %s357
      %s359 = sshll.u32 [#allocation7], 4
      %s360 = int_to_ptr.vmem [resolvable:$true] %s359
      %365 = dma.vmem_to_hbm [thread:$0]  %s360, 256, %s2, [#allocation6], 128, 128, 8
    $region13: #{tpu_custom_call.1} parent=1 // pred_fallthru
      _
    // Predicated region
    $region14: #{tpu_custom_call.1} parent=1 // pred_check
      _
    $region15: #{tpu_custom_call.1} parent=1 // pred_check_branch
      %367 = sbr.rel (0) target = $region17
    $region16: #{tpu_custom_call.1} parent=1 // pred_region
      %368 = dma.done [#allocation6], 256
    $region17: #{tpu_custom_call.1} parent=1 // pred_fallthru
      _
    %369 = vsyncpa [#allocation5], 1
    %370 = vsyncpa [#allocation6], 1

</llo_original>
